<compile_context>
chip_gen: v5e
topology: v5e:2x2
jax: 0.10.0
libtpu: 0.0.40
codegen_flags: <defaults>
</compile_context>

<pallas_src>
import functools

import jax
import jax.numpy as jnp
from jax.experimental import pallas as pl
from jax.experimental.pallas import tpu as pltpu


def _conv1x1_bn_kernel(x_ref, w_ref, bn_ref, o_ref):
    # x_ref:  (1, Cin, TP)   one spatial tile of one image (channels on sublanes)
    # w_ref:  (Cout, Cin)    raw (unscaled) conv weight in matmul dtype
    # bn_ref: (Cout, 2) f32  [:, 0] = gamma/sqrt(var+eps), [:, 1] = beta - mean*scale
    # o_ref:  (1, Cout, TP)
    acc = jnp.dot(w_ref[...], x_ref[0], preferred_element_type=jnp.float32)
    bn = bn_ref[...]
    scale = bn[:, 0:1]
    shift = bn[:, 1:2]
    o_ref[0] = (acc * scale + shift).astype(o_ref.dtype)


def _pick_spatial_tile(itemsize):
    """Generation-aware default: bigger tiles on 128-MiB-VMEM parts (v5e/v6e)."""
    try:
        info = pltpu.get_tpu_info()
        vmem_cap = int(getattr(info, "vmem_capacity_bytes", 64 * 1024 * 1024))
    except Exception:
        vmem_cap = 64 * 1024 * 1024
    base = 1024 if vmem_cap >= 100 * 1024 * 1024 else 512
    mult = max(1, 4 // max(1, itemsize))   # f32 -> 1, bf16 -> 2, int8 -> 4
    return base * mult


@functools.partial(jax.jit,
                   static_argnames=("stride", "eps", "spatial_tile",
                                    "matmul_dtype"))
def downsample_layer_forward(x_nchw, weight, gamma, beta, running_mean,
                             running_var, *, stride=1, eps=1e-5,
                             spatial_tile=None, matmul_dtype=None):
    """1x1 conv (no bias) with stride, then BatchNorm2d (eval / running stats).

    x_nchw: (N, Cin, H, W), weight: (Cout, Cin, 1, 1) -- PyTorch shapes.
    Returns (N, Cout, Ho, Wo), matching conv2d(kernel_size=1, padding=0) + BN.
    """
    n, cin, h, w = x_nchw.shape
    cout = weight.shape[0]
    out_dtype = x_nchw.dtype
    if matmul_dtype is None:
        matmul_dtype = x_nchw.dtype

    # kernel_size=1, padding=0: strided conv == spatial subsample + per-pixel matmul.
    x_s = x_nchw[:, :, ::stride, ::stride] if stride > 1 else x_nchw
    ho, wo = x_s.shape[2], x_s.shape[3]
    p = ho * wo

    # NCHW stays NCHW on the large-spatial path: flatten spatial dims only.
    x_s3 = x_s.reshape(n, cin, p).astype(matmul_dtype)

    # Small-spatial stages: flatten batch into the lane/matmul-N dimension so
    # output stores stay lane-dense and the MXU N dim is well filled.
    flatten_batch = (p < 256) and (n > 1)
    if flatten_batch:
        x_mat = jnp.transpose(x_s3, (1, 0, 2)).reshape(1, cin, n * p)
        n_eff, p_eff = 1, n * p
    else:
        x_mat = x_s3
        n_eff, p_eff = n, p

    # Raw weight in matmul dtype; BN applied in f32 in the kernel epilogue.
    w2 = weight.reshape(cout, cin).astype(matmul_dtype)
    scale = gamma.astype(jnp.float32) / jnp.sqrt(
        running_var.astype(jnp.float32) + eps)
    shift = beta.astype(jnp.float32) - running_mean.astype(jnp.float32) * scale
    bn = jnp.stack([scale, shift], axis=1)          # (Cout, 2) f32

    # --- Spatial tile selection (validated, lane-dense) --------------------
    itemsize = jnp.dtype(matmul_dtype).itemsize
    out_itemsize = jnp.dtype(out_dtype).itemsize
    if spatial_tile is None:
        spatial_tile = _pick_spatial_tile(itemsize)
    if p_eff <= spatial_tile:
        tp = p_eff                                   # whole extent: full block
    else:
        tp = max(128, (spatial_tile // 128) * 128)   # multiple of 128
    # v7x megacore: ensure >= 2 grid points along a "parallel" axis if possible.
    num_sp = -(-p_eff // tp)
    if n_eff * num_sp < 2 and p_eff >= 256:
        tp = 128 * (((p_eff + 1) // 2 + 127) // 128)
        num_sp = -(-p_eff // tp)
    grid = (n_eff, num_sp)

    # --- VMEM budget derived from the actual buffer footprint --------------
    x_tile_b = cin * tp * itemsize                   # double buffered
    o_tile_b = cout * tp * out_itemsize              # double buffered
    w_b = cout * cin * itemsize                      # single buffered
    bn_b = cout * 128 * 4                            # lane-padded, single buf
    need = 2 * x_tile_b + 2 * o_tile_b + w_b + bn_b
    vmem_limit = max(32 << 20, min(int(need * 1.25) + (8 << 20), 100 << 20))

    cost = pl.CostEstimate(
        flops=2 * n * p * cin * cout,
        transcendentals=0,
        bytes_accessed=(n * cin * p * itemsize       # activations in
                        + cout * cin * itemsize      # weights
                        + cout * 2 * 4               # BN scale/shift
                        + n * cout * p * out_itemsize))  # output

    out3 = pl.pallas_call(
        _conv1x1_bn_kernel,
        out_shape=jax.ShapeDtypeStruct((n_eff, cout, p_eff), out_dtype),
        grid=grid,
        in_specs=[
            pl.BlockSpec((1, cin, tp), lambda ni, pi: (ni, 0, pi)),
            # Grid-invariant operands: single-buffer to save VMEM.
            pl.BlockSpec((cout, cin), lambda ni, pi: (0, 0),
                         pipeline_mode=pl.Buffered(1)),
            pl.BlockSpec((cout, 2), lambda ni, pi: (0, 0),
                         pipeline_mode=pl.Buffered(1)),
        ],
        out_specs=pl.BlockSpec((1, cout, tp), lambda ni, pi: (ni, 0, pi)),
        compiler_params=pltpu.CompilerParams(
            dimension_semantics=("parallel", "parallel"),
            vmem_limit_bytes=vmem_limit),
        cost_estimate=cost,
    )(x_mat, w2, bn)

    if flatten_batch:
        out = (out3.reshape(cout, n, p)
               .transpose(1, 0, 2)
               .reshape(n, cout, ho, wo))
    else:
        out = out3.reshape(n, cout, ho, wo)
    return out


def _reference(x, weight, gamma, beta, mean, var, stride, eps=1e-5):
    cout, cin = weight.shape[0], weight.shape[1]
    xs = x[:, :, ::stride, ::stride] if stride > 1 else x
    ref = jnp.einsum("nchw,oc->nohw", xs, weight.reshape(cout, cin))
    ref = (ref - mean[None, :, None, None]) / jnp.sqrt(
        var[None, :, None, None] + eps)
    return ref * gamma[None, :, None, None] + beta[None, :, None, None]


if __name__ == "__main__":
    key = jax.random.PRNGKey(0)
    k_x, k_w, k_g, k_b, k_m, k_v, k_x2 = jax.random.split(key, 7)

    N, Cin, H, W = 2, 4, 16, 16
    Cout = 8
    stride = 2

    x = jax.random.normal(k_x, (N, Cin, H, W), dtype=jnp.float32)
    weight = jax.random.normal(k_w, (Cout, Cin, 1, 1), dtype=jnp.float32) * 0.1
    gamma = jax.random.normal(k_g, (Cout,), dtype=jnp.float32) * 0.1 + 1.0
    beta = jax.random.normal(k_b, (Cout,), dtype=jnp.float32) * 0.1
    running_mean = jax.random.normal(k_m, (Cout,), dtype=jnp.float32) * 0.1
    running_var = jax.random.uniform(k_v, (Cout,), dtype=jnp.float32,
                                     minval=0.5, maxval=1.5)

    # Case 1: stride=2 downsample, small spatial (p=64 < 256) -> batch is
    # flattened into the lane dim (lane-dense 128-wide output), default tile.
    out = downsample_layer_forward(x, weight, gamma, beta, running_mean,
                                   running_var, stride=stride)
    jax.block_until_ready(out)
    ref = _reference(x, weight, gamma, beta, running_mean, running_var, stride)
    assert out.shape == (N, Cout, H // stride, W // stride)
    assert jnp.max(jnp.abs(out - ref)) < 1e-4

    # Case 2: stride=1, p=256 with a 128 tile -> per-image path, grid (2, 2).
    out2 = downsample_layer_forward(x, weight, gamma, beta, running_mean,
                                    running_var, stride=1, spatial_tile=128)
    jax.block_until_ready(out2)
    ref2 = _reference(x, weight, gamma, beta, running_mean, running_var, 1)
    assert jnp.max(jnp.abs(out2 - ref2)) < 1e-4

    # Case 3: batch=1, p=192, tile=128 -> partial (masked) final spatial block.
    x3 = jax.random.normal(k_x2, (1, Cin, 16, 12), dtype=jnp.float32)
    out3 = downsample_layer_forward(x3, weight, gamma, beta, running_mean,
                                    running_var, stride=1, spatial_tile=128)
    jax.block_until_ready(out3)
    ref3 = _reference(x3, weight, gamma, beta, running_mean, running_var, 1)
    assert jnp.max(jnp.abs(out3 - ref3)) < 1e-4

    # Case 4: bf16 MXU path with f32 accumulation + f32 BN epilogue.
    out4 = downsample_layer_forward(x, weight, gamma, beta, running_mean,
                                    running_var, stride=stride,
                                    matmul_dtype=jnp.bfloat16)
    jax.block_until_ready(out4)
    assert jnp.max(jnp.abs(out4 - ref)) < 3e-2

    print("KERNEL_OK")
</pallas_src>

<mosaic_0001>
module attributes {stable_mosaic.version = 11 : i64} {
  func.func @_conv1x1_bn_kernel(%arg0: i32, %arg1: i32, %arg2: memref<1x4x128xf32, #tpu.memory_space<vmem>>, %arg3: memref<8x4xf32, #tpu.memory_space<vmem>>, %arg4: memref<8x2xf32, #tpu.memory_space<vmem>>, %arg5: memref<1x8x128xf32, #tpu.memory_space<vmem>>) attributes {dimension_semantics = [#tpu.dimension_semantics<parallel>, #tpu.dimension_semantics<parallel>], iteration_bounds = array<i64: 1, 1>, scalar_prefetch = 0 : i64, scratch_operands = 0 : i64, tpu.core_type = #tpu.core_type<tc>, window_params = [{transform_indices = @transform_0, window_bounds = array<i64: 1, 4, 128>}, {pipeline_mode = #tpu.pipeline_mode<synchronous>, transform_indices = @transform_1, window_bounds = array<i64: 8, 4>}, {pipeline_mode = #tpu.pipeline_mode<synchronous>, transform_indices = @transform_2, window_bounds = array<i64: 8, 2>}, {transform_indices = @transform_3, window_bounds = array<i64: 1, 8, 128>}]} {
    %c0 = arith.constant 0 : index
    %c0_0 = arith.constant 0 : index
    %0 = vector.load %arg3[%c0, %c0_0] : memref<8x4xf32, #tpu.memory_space<vmem>>, vector<8x4xf32>
    %c0_1 = arith.constant 0 : index
    %c0_2 = arith.constant 0 : index
    %c0_3 = arith.constant 0 : index
    %1 = vector.load %arg2[%c0_1, %c0_2, %c0_3] : memref<1x4x128xf32, #tpu.memory_space<vmem>>, vector<1x4x128xf32>
    %2 = vector.shape_cast %1 : vector<1x4x128xf32> to vector<4x128xf32>
    %cst = arith.constant dense<0.000000e+00> : vector<8x128xf32>
    %3 = tpu.matmul %0, %2, %cst {dimension_numbers = #tpu.dot_dimension_numbers<[1], [0], [0], [1], [0, 0, 1, 1], [], []>} : vector<8x4xf32>, vector<4x128xf32>, vector<8x128xf32> -> vector<8x128xf32>
    %c0_4 = arith.constant 0 : index
    %c0_5 = arith.constant 0 : index
    %4 = vector.load %arg4[%c0_4, %c0_5] : memref<8x2xf32, #tpu.memory_space<vmem>>, vector<8x2xf32>
    %5 = vector.extract_strided_slice %4 {offsets = [0, 0], sizes = [8, 1], strides = [1, 1]} : vector<8x2xf32> to vector<8x1xf32>
    %6 = vector.extract_strided_slice %4 {offsets = [0, 1], sizes = [8, 1], strides = [1, 1]} : vector<8x2xf32> to vector<8x1xf32>
    %7 = vector.broadcast %5 : vector<8x1xf32> to vector<8x128xf32>
    %8 = arith.mulf %3, %7 : vector<8x128xf32>
    %9 = vector.broadcast %6 : vector<8x1xf32> to vector<8x128xf32>
    %10 = arith.addf %8, %9 : vector<8x128xf32>
    %c0_6 = arith.constant 0 : index
    %c0_7 = arith.constant 0 : index
    %c0_8 = arith.constant 0 : index
    %11 = vector.load %arg5[%c0_6, %c0_7, %c0_8] : memref<1x8x128xf32, #tpu.memory_space<vmem>>, vector<1x8x128xf32>
    %12 = vector.shape_cast %11 : vector<1x8x128xf32> to vector<8x128xf32>
    %13 = vector.shape_cast %10 : vector<8x128xf32> to vector<1x8x128xf32>
    tpu.vector_store %arg5[%c0_6, %c0_7, %c0_8], %13 {strides = array<i32>} : memref<1x8x128xf32, #tpu.memory_space<vmem>>, vector<1x8x128xf32>,
    return
  }
  func.func @transform_0(%arg0: i32, %arg1: i32) -> (i32, i32, i32) {
    %c0_i32 = arith.constant 0 : i32
    %c0_i32_0 = arith.constant 0 : i32
    return %arg0, %c0_i32, %arg1 : i32, i32, i32
  }
  func.func @transform_1(%arg0: i32, %arg1: i32) -> (i32, i32) {
    %c0_i32 = arith.constant 0 : i32
    %c0_i32_0 = arith.constant 0 : i32
    %c0_i32_1 = arith.constant 0 : i32
    return %c0_i32, %c0_i32_0 : i32, i32
  }
  func.func @transform_2(%arg0: i32, %arg1: i32) -> (i32, i32) {
    %c0_i32 = arith.constant 0 : i32
    %c0_i32_0 = arith.constant 0 : i32
    %c0_i32_1 = arith.constant 0 : i32
    return %c0_i32, %c0_i32_0 : i32, i32
  }
  func.func @transform_3(%arg0: i32, %arg1: i32) -> (i32, i32, i32) {
    %c0_i32 = arith.constant 0 : i32
    %c0_i32_0 = arith.constant 0 : i32
    return %arg0, %c0_i32, %arg1 : i32, i32, i32
  }
}

</mosaic_0001>

<llo_original>
// kernel: downsample_layer_forward.1
$region0: #{downsample_layer_forward.1}
  #allocation0 [shape = 'u32[]', space=smem, size = 0x4, offset = 0x4, fixed_abs, tag = 'smem constant byte address 0x4 - core index']
  #allocation1 [shape = 'u32[72,128]{1,0:T(1,128)}', space=vmem, size = 0x9000, scoped, tag = 'internal scratch']
  %s0 = inlined_call_operand.vmem [shape: f32[1,4,128], index: 0, kind: input, shape index: {}]
  %s1 = inlined_call_operand.vmem [shape: f32[8,4], index: 1, kind: input, shape index: {}]
  %s2 = inlined_call_operand.vmem [shape: f32[8,2], index: 2, kind: input, shape index: {}]
  %s3 = inlined_call_operand.vmem [shape: f32[1,8,128], index: 3, kind: output, shape index: {}]
  %s4 = sld [smem:[#allocation0]]
  $region22: #{downsample_layer_forward.1} parent=0
    _
  %s6 = ssub.s32 1, %s4
  %s7 = scalar_select 0, %s6, %s4
  // Predicated region
  $region2: #{downsample_layer_forward.1} parent=0 // pred_check
    _
  $region3: #{downsample_layer_forward.1} parent=0 // pred_check_branch
    %9 = sbr.rel (0) target = $region5
  $region4: #{downsample_layer_forward.1} parent=0 // pred_region
    _
  $region5: #{downsample_layer_forward.1} parent=0 // pred_fallthru
    _
  // Predicated region
  $region6: #{downsample_layer_forward.1} parent=0 // pred_check
    _
  $region7: #{downsample_layer_forward.1} parent=0 // pred_check_branch
    %11 = sbr.rel (0) target = $region9
  $region8: #{downsample_layer_forward.1} parent=0 // pred_region
    _
  $region9: #{downsample_layer_forward.1} parent=0 // pred_fallthru
    _
  // Predicated region
  $region10: #{downsample_layer_forward.1} parent=0 // pred_check
    _
  $region11: #{downsample_layer_forward.1} parent=0 // pred_check_branch
    %13 = sbr.rel (0) target = $region13
  $region12: #{downsample_layer_forward.1} parent=0 // pred_region
    _
  $region13: #{downsample_layer_forward.1} parent=0 // pred_fallthru
    _
  %v14 = vld [vmem:[%s1] sm:$0xff]
  %v15 = vld [vmem:[%s0] sm:$0xf]
  %vm16 = vcmask 31744
  %v18 = vsel %vm16, %v14, 0
  %vm20 = vcmask 1043456
  %v22 = vsel %vm20, %v15, 0
  %24 = vmatpush.msra.mxu0 0.0
  %25 = vmatpush.msra.mxu0 0.0
  %26 = vmatpush.msra.mxu0 0.0
  %27 = vmatpush.msra.mxu0 0.0
  %28 = vmatpush.msra.mxu0 0.0
  %29 = vmatpush.msra.mxu0 0.0
  %30 = vmatpush.msra.mxu0 0.0
  %31 = vmatpush.msra.mxu0 0.0
  %32 = vmatpush.msra.mxu0 0.0
  %33 = vmatpush.msra.mxu0 0.0
  %34 = vmatpush.msra.mxu0 0.0
  %35 = vmatpush.msra.mxu0 0.0
  %36 = vmatpush.msra.mxu0 0.0
  %37 = vmatpush.msra.mxu0 0.0
  %38 = vmatpush.msra.mxu0 0.0
  %39 = vmatpush.msra.mxu0 %v22
  %40 = vmatmul.f32.gmra.mxu0 %v18
  %v41 = vpop.f32.mrf.mxu0
  %v42 = vadd.f32 0.0, %v41
  %43 = vdwg.mxu0
  %v44 = vld [vmem:[%s2] sm:$0xff]
  %46 = vset.pattern.permute.xlu0 0
  %47 = vperm.xlu0 %46, %v44
  %v48 = vpop.permute.xlu0 %47
  %v50 = vmul.f32 %v42, %v48
  %51 = vset.pattern.permute.xlu0 1
  %52 = vperm.xlu0 %51, %v44
  %v53 = vpop.permute.xlu0 %52
  %v55 = vadd.f32 %v50, %v53
  %56 = vst [vmem:[%s3] sm:$0xff] %v55
  // Predicated region
  $region14: #{downsample_layer_forward.1} parent=0 // pred_check
    _
  $region15: #{downsample_layer_forward.1} parent=0 // pred_check_branch
    %58 = sbr.rel (0) target = $region17
  $region16: #{downsample_layer_forward.1} parent=0 // pred_region
    _
  $region17: #{downsample_layer_forward.1} parent=0 // pred_fallthru
    _
  // Predicated region
  $region18: #{downsample_layer_forward.1} parent=0 // pred_check
    _
  $region19: #{downsample_layer_forward.1} parent=0 // pred_check_branch
    %60 = sbr.rel (0) target = $region21
  $region20: #{downsample_layer_forward.1} parent=0 // pred_region
    _
  $region21: #{downsample_layer_forward.1} parent=0 // pred_fallthru
    _

</llo_original>
